<compile_context>
chip_gen: v7x
topology: tpu7x:2x2x1
jax: 0.10.0
libtpu: 0.0.40
codegen_flags: <defaults>
</compile_context>

<pallas_src>
import functools

import jax
import jax.numpy as jnp
import numpy as np
from jax.experimental import pallas as pl
from jax.experimental.pallas import tpu as pltpu


def _round_up(x, m):
    return (x + m - 1) // m * m


# ----------------------------------------------------------------------------
# Generic tiled matmul-with-bias kernel:  (M, K) @ (K, N) + b  ->  (M, N)
# Used for the hoisted LSTM input projection and for the decoder.
# ----------------------------------------------------------------------------
def _matmul_bias_kernel(x_ref, w_ref, b_ref, o_ref):
    acc = jnp.dot(x_ref[...], w_ref[...], preferred_element_type=jnp.float32)
    o_ref[...] = (acc + b_ref[...]).astype(o_ref.dtype)


def matmul_bias(x, w, b, *, tm=512, tn=512, out_dtype=jnp.float32):
    """x: (M, K) f32, w: (K, N) f32, b: (N,) f32 -> (M, N) out_dtype."""
    M, K = x.shape
    Kw, N = w.shape
    assert K == Kw
    tm = min(tm, _round_up(M, 8))
    tn = min(tn, _round_up(N, 128))
    Mp = _round_up(M, tm)
    Np = _round_up(N, tn)
    xp = jnp.pad(x, ((0, Mp - M), (0, 0))) if Mp != M else x
    wp = jnp.pad(w, ((0, 0), (0, Np - N))) if Np != N else w
    bp = (jnp.pad(b, (0, Np - N)) if Np != N else b).reshape(1, Np)

    # Put the LARGER operand's tile index on the OUTER grid axis so it is
    # DMA'd from HBM only once (kills the decoder-weight re-fetch
    # amplification: previously W was re-read Mp/tm times).
    weight_major = wp.size >= xp.size
    if weight_major:
        grid = (Np // tn, Mp // tm)                       # (j outer, i inner)
        x_spec = pl.BlockSpec((tm, K), lambda j, i: (i, 0))
        w_spec = pl.BlockSpec((K, tn), lambda j, i: (0, j))
        b_spec = pl.BlockSpec((1, tn), lambda j, i: (0, j))
        o_spec = pl.BlockSpec((tm, tn), lambda j, i: (i, j))
    else:
        grid = (Mp // tm, Np // tn)                       # (i outer, j inner)
        x_spec = pl.BlockSpec((tm, K), lambda i, j: (i, 0))
        w_spec = pl.BlockSpec((K, tn), lambda i, j: (0, j))
        b_spec = pl.BlockSpec((1, tn), lambda i, j: (0, j))
        o_spec = pl.BlockSpec((tm, tn), lambda i, j: (i, j))

    # TODO(synk): for K >= ~2048 on v5e add a K ("arbitrary") grid axis with an
    # f32 accumulator scratch instead of full-K blocks.
    out = pl.pallas_call(
        _matmul_bias_kernel,
        grid=grid,
        in_specs=[x_spec, w_spec, b_spec],
        out_specs=o_spec,
        out_shape=jax.ShapeDtypeStruct((Mp, Np), out_dtype),
        compiler_params=pltpu.CompilerParams(
            dimension_semantics=("parallel", "parallel"),
            vmem_limit_bytes=64 * 1024 * 1024),
    )(xp, wp, bp)
    if Mp != M or Np != N:
        out = out[:M, :N]
    return out


# ----------------------------------------------------------------------------
# LSTM recurrence kernel.  Grid = (batch_blocks, time_chunks); time is the
# inner "arbitrary" axis.  gates_x (= x @ W_ih + b, bf16 by default) is
# precomputed, so each timestep only does h_prev @ W_hh + gate elementwise.
# h/c live in VMEM scratch and persist across time chunks; (re-)initialized
# at t == 0 of every batch block.
# ----------------------------------------------------------------------------
def _lstm_chunk_kernel(*refs, chunk, seq_len, has_init):
    if has_init:
        gx_ref, whh_ref, h0_ref, c0_ref, hs_ref, cn_ref, h_scr, c_scr = refs
    else:
        gx_ref, whh_ref, hs_ref, cn_ref, h_scr, c_scr = refs

    t = pl.program_id(1)
    Hp = h_scr.shape[1]

    @pl.when(t == 0)
    def _():
        if has_init:
            h_scr[...] = h0_ref[...]
            c_scr[...] = c0_ref[...]
        else:
            h_scr[...] = jnp.zeros_like(h_scr)
            c_scr[...] = jnp.zeros_like(c_scr)

    w_hh = whh_ref[...]
    need_mask = (seq_len % chunk) != 0

    def sigmoid(x):
        # sigmoid(x) = 0.5*(1 + tanh(x/2)): one EUP push (tanh) instead of two
        # (exp + reciprocal) -> fewer pushes on the single EUP VLIW slot; the
        # extra mul/add is free VALU filler.
        return 0.5 * jnp.tanh(0.5 * x) + 0.5

    # Statically unrolled chunk of timesteps (static indices -> clean lowering).
    # TODO(synk): switch to lax.fori_loop(..., unroll=True) if bundle dumps
    # show vreg spills at large Hp*bblk with chunk >= 16.
    for tt in range(chunk):
        h_prev = h_scr[...]
        c_prev = c_scr[...]
        gates = gx_ref[tt].astype(jnp.float32) + jnp.dot(
            h_prev, w_hh, preferred_element_type=jnp.float32)
        # PyTorch gate order i, f, g, o; each gate starts on a 128-lane boundary.
        i = sigmoid(gates[:, 0 * Hp:1 * Hp])
        f = sigmoid(gates[:, 1 * Hp:2 * Hp])
        g = jnp.tanh(gates[:, 2 * Hp:3 * Hp])
        o = sigmoid(gates[:, 3 * Hp:4 * Hp])
        c_new = f * c_prev + i * g
        h_new = o * jnp.tanh(c_new)

        if need_mask:  # freeze state on padded (t >= seq_len) steps
            valid = (t * chunk + tt) < seq_len
            h_new = jnp.where(valid, h_new, h_prev)
            c_new = jnp.where(valid, c_new, c_prev)

        h_scr[...] = h_new
        c_scr[...] = c_new
        hs_ref[tt] = h_new

    @pl.when(t == pl.num_programs(1) - 1)
    def _():
        cn_ref[...] = c_scr[...]


def lstm_recurrence(gates_x, w_hh_t, h0=None, c0=None, *, chunk=16,
                    num_batch_blocks=1):
    """gates_x: (S, Bp, 4Hp); w_hh_t: (Hp, 4Hp); optional h0/c0: (Bp, Hp).

    Returns (hs (S, Bp, Hp) f32, c_n (Bp, Hp) f32).  h_n is hs[-1].
    """
    S, Bp, G = gates_x.shape
    Hp = w_hh_t.shape[0]
    assert G == 4 * Hp
    has_init = h0 is not None

    chunk = max(1, min(chunk, S))
    Sp = _round_up(S, chunk)
    if Sp != S:
        gates_x = jnp.pad(gates_x, ((0, Sp - S), (0, 0), (0, 0)))

    # TODO(synk): set num_batch_blocks=2 on v7x (2 TensorCores) only; on
    # single-TC v5e/v6e splitting just halves MXU M and doubles grid steps.
    if (num_batch_blocks > 1 and Bp % num_batch_blocks == 0
            and (Bp // num_batch_blocks) % 8 == 0):
        bblk = Bp // num_batch_blocks
    else:
        bblk = Bp
    grid = (Bp // bblk, Sp // chunk)

    single_buf = dict(pipeline_mode=pl.Buffered(1))  # never-changing blocks
    in_specs = [
        pl.BlockSpec((chunk, bblk, 4 * Hp), lambda b, t: (t, b, 0)),
        pl.BlockSpec((Hp, 4 * Hp), lambda b, t: (0, 0), **single_buf),
    ]
    args = [gates_x, w_hh_t]
    if has_init:
        in_specs += [
            pl.BlockSpec((bblk, Hp), lambda b, t: (b, 0), **single_buf),
            pl.BlockSpec((bblk, Hp), lambda b, t: (b, 0), **single_buf),
        ]
        args += [h0, c0]

    kernel = functools.partial(_lstm_chunk_kernel, chunk=chunk, seq_len=S,
                               has_init=has_init)
    hs, cn = pl.pallas_call(
        kernel,
        grid=grid,
        in_specs=in_specs,
        out_specs=[
            pl.BlockSpec((chunk, bblk, Hp), lambda b, t: (t, b, 0)),
            pl.BlockSpec((bblk, Hp), lambda b, t: (b, 0)),
        ],
        scratch_shapes=[
            pltpu.VMEM((bblk, Hp), jnp.float32),
            pltpu.VMEM((bblk, Hp), jnp.float32),
        ],
        out_shape=(
            jax.ShapeDtypeStruct((Sp, Bp, Hp), jnp.float32),
            jax.ShapeDtypeStruct((Bp, Hp), jnp.float32),
        ),
        compiler_params=pltpu.CompilerParams(
            dimension_semantics=("parallel", "arbitrary"),
            vmem_limit_bytes=64 * 1024 * 1024),
    )(*args)
    return hs[:S], cn


# ----------------------------------------------------------------------------
# Full RNN forward
# ----------------------------------------------------------------------------
def rnn_forward(mb, params, hidden=None, *, chunk=16,
                gx_dtype=jnp.bfloat16, num_batch_blocks=1):
    """mb: (S, B) int32 tokens -> (logits (S,B,V), (h_n, c_n))."""
    S, B = mb.shape
    H = params["n_hid"]
    Hp = params["n_hid_padded"]
    n_layers = len(params["lstm"])
    Bp = _round_up(B, 8)
    V = params["b_dec"].shape[0]

    # Embedding lookup (gather) kept as plain-JAX glue.
    x = params["embedding"][mb]                        # (S, B, E)
    if Bp != B:
        x = jnp.pad(x, ((0, 0), (0, Bp - B), (0, 0)))  # (S, Bp, E)

    if hidden is not None:
        h_in, c_in = hidden                            # (n_layers, B, H)
        pad = ((0, 0), (0, Bp - B), (0, Hp - H))
        h0_all = jnp.pad(h_in.astype(jnp.float32), pad)
        c0_all = jnp.pad(c_in.astype(jnp.float32), pad)

    layer_in = x
    hn_list, cn_list = [], []
    for l, lp in enumerate(params["lstm"]):
        E_l = layer_in.shape[-1]
        # Hoisted input projection: one tiled MXU matmul over all S*Bp rows,
        # written in bf16 (default) to halve the gx HBM stream the recurrence
        # re-reads every step.
        gx = matmul_bias(layer_in.reshape(S * Bp, E_l), lp["w_ih_t"],
                         lp["bias"], out_dtype=gx_dtype)
        gx = gx.reshape(S, Bp, 4 * Hp)
        h0 = h0_all[l] if hidden is not None else None
        c0 = c0_all[l] if hidden is not None else None
        hs, cn = lstm_recurrence(gx, lp["w_hh_t"], h0, c0, chunk=chunk,
                                 num_batch_blocks=num_batch_blocks)
        hn_list.append(hs[S - 1, :B, :H])
        cn_list.append(cn[:B, :H])
        layer_in = hs                                  # (S, Bp, Hp)

    # TODO(synk): fuse the next layer's input projection (and the decoder for
    # the last layer) into the recurrence chunk epilogue to kill the hs HBM
    # round trip; kept as separate tiled matmuls here.
    logits = matmul_bias(layer_in.reshape(S * Bp, Hp), params["w_dec_t"],
                         params["b_dec"], out_dtype=jnp.float32)
    logits = logits.reshape(S, Bp, V)[:, :B, :]
    return logits, (jnp.stack(hn_list), jnp.stack(cn_list))


# ----------------------------------------------------------------------------
# Parameters: raw PyTorch-layout params + padded/transposed kernel layout
# (each gate of the 4H axis starts at a multiple of Hp = round_up(H, 128)).
# ----------------------------------------------------------------------------
def init_params(key, vocab_sz, emb_sz, n_hid, n_layers):
    Hp = _round_up(n_hid, 128)
    keys = jax.random.split(key, 3 + 4 * n_layers)
    k = 1.0 / np.sqrt(n_hid)

    embedding = jax.random.normal(keys[0], (vocab_sz, emb_sz), jnp.float32)
    lstm_raw = []
    ki = 1
    for l in range(n_layers):
        in_sz = emb_sz if l == 0 else n_hid
        w_ih = jax.random.uniform(keys[ki], (4 * n_hid, in_sz), jnp.float32, -k, k)
        w_hh = jax.random.uniform(keys[ki + 1], (4 * n_hid, n_hid), jnp.float32, -k, k)
        b_ih = jax.random.uniform(keys[ki + 2], (4 * n_hid,), jnp.float32, -k, k)
        b_hh = jax.random.uniform(keys[ki + 3], (4 * n_hid,), jnp.float32, -k, k)
        ki += 4
        lstm_raw.append(dict(w_ih=w_ih, w_hh=w_hh, b_ih=b_ih, b_hh=b_hh))
    w_dec = jax.random.uniform(keys[ki], (vocab_sz, n_hid), jnp.float32, -k, k)
    b_dec = jax.random.uniform(keys[ki + 1], (vocab_sz,), jnp.float32, -k, k)

    lstm_kernel = []
    for l, lp in enumerate(lstm_raw):
        in_sz = emb_sz if l == 0 else n_hid
        in_p = emb_sz if l == 0 else Hp
        w_ih_t = jnp.zeros((in_p, 4 * Hp), jnp.float32)
        w_hh_t = jnp.zeros((Hp, 4 * Hp), jnp.float32)
        bias = jnp.zeros((4 * Hp,), jnp.float32)
        for g in range(4):
            sl = slice(g * n_hid, (g + 1) * n_hid)
            w_ih_t = w_ih_t.at[:in_sz, g * Hp:g * Hp + n_hid].set(lp["w_ih"][sl, :].T)
            w_hh_t = w_hh_t.at[:n_hid, g * Hp:g * Hp + n_hid].set(lp["w_hh"][sl, :].T)
            bias = bias.at[g * Hp:g * Hp + n_hid].set(lp["b_ih"][sl] + lp["b_hh"][sl])
        lstm_kernel.append(dict(w_ih_t=w_ih_t, w_hh_t=w_hh_t, bias=bias))

    w_dec_t = jnp.zeros((Hp, vocab_sz), jnp.float32).at[:n_hid, :].set(w_dec.T)

    return dict(embedding=embedding, lstm_raw=lstm_raw, w_dec=w_dec, b_dec=b_dec,
                lstm=lstm_kernel, w_dec_t=w_dec_t,
                n_hid=n_hid, n_hid_padded=Hp)


# ----------------------------------------------------------------------------
# Pure-JAX reference (uses the raw, unpadded PyTorch-layout parameters)
# ----------------------------------------------------------------------------
def rnn_reference(mb, params, hidden=None):
    x = params["embedding"][mb]
    S, B, _ = x.shape
    H = params["n_hid"]
    layer_in = x
    h_list, c_list = [], []
    for l, lp in enumerate(params["lstm_raw"]):
        w_ih_t = lp["w_ih"].T
        w_hh_t = lp["w_hh"].T
        bias = lp["b_ih"] + lp["b_hh"]

        def step(carry, x_t, w_ih_t=w_ih_t, w_hh_t=w_hh_t, bias=bias):
            h, c = carry
            gates = x_t @ w_ih_t + h @ w_hh_t + bias
            i, f, g, o = jnp.split(gates, 4, axis=-1)
            c = jax.nn.sigmoid(f) * c + jax.nn.sigmoid(i) * jnp.tanh(g)
            h = jax.nn.sigmoid(o) * jnp.tanh(c)
            return (h, c), h

        if hidden is None:
            init = (jnp.zeros((B, H), jnp.float32), jnp.zeros((B, H), jnp.float32))
        else:
            init = (hidden[0][l], hidden[1][l])
        (hn, cn), hs = jax.lax.scan(step, init, layer_in)
        h_list.append(hn)
        c_list.append(cn)
        layer_in = hs
    logits = layer_in @ params["w_dec"].T + params["b_dec"]
    return logits, (jnp.stack(h_list), jnp.stack(c_list))


if __name__ == "__main__":
    # Small shapes: vocab=64, emb=32, hid=32, n_layers=2, seq=8, batch=2.
    vocab_sz, emb_sz, n_hid, n_layers = 64, 32, 32, 2
    S, B = 8, 2

    key = jax.random.PRNGKey(0)
    pkey, dkey, hkey = jax.random.split(key, 3)
    params = init_params(pkey, vocab_sz, emb_sz, n_hid, n_layers)
    mb = jax.random.randint(dkey, (S, B), 0, vocab_sz, dtype=jnp.int32)

    # --- 1) f32-gates path, no initial hidden: tight check vs. reference ----
    logits, (h_n, c_n) = rnn_forward(mb, params, hidden=None,
                                     gx_dtype=jnp.float32)
    logits = jax.block_until_ready(logits)
    h_n = jax.block_until_ready(h_n)
    c_n = jax.block_until_ready(c_n)
    assert logits.shape == (S, B, vocab_sz)
    assert h_n.shape == (n_layers, B, n_hid)
    assert c_n.shape == (n_layers, B, n_hid)

    with jax.default_matmul_precision("highest"):
        ref_logits, (ref_h, ref_c) = rnn_reference(mb, params)
    np.testing.assert_allclose(np.asarray(logits), np.asarray(ref_logits),
                               rtol=1e-4, atol=1e-4)
    np.testing.assert_allclose(np.asarray(h_n), np.asarray(ref_h),
                               rtol=1e-4, atol=1e-4)
    np.testing.assert_allclose(np.asarray(c_n), np.asarray(ref_c),
                               rtol=1e-4, atol=1e-4)

    # --- 2) f32-gates path with an explicit initial hidden state ------------
    h_init = 0.1 * jax.random.normal(hkey, (n_layers, B, n_hid), jnp.float32)
    c_init = 0.1 * jax.random.normal(jax.random.fold_in(hkey, 1),
                                     (n_layers, B, n_hid), jnp.float32)
    logits_h, (h_n2, c_n2) = rnn_forward(mb, params, hidden=(h_init, c_init),
                                         gx_dtype=jnp.float32)
    logits_h = jax.block_until_ready(logits_h)
    with jax.default_matmul_precision("highest"):
        ref_lh, (ref_h2, ref_c2) = rnn_reference(mb, params,
                                                 hidden=(h_init, c_init))
    np.testing.assert_allclose(np.asarray(logits_h), np.asarray(ref_lh),
                               rtol=1e-4, atol=1e-4)
    np.testing.assert_allclose(np.asarray(h_n2), np.asarray(ref_h2),
                               rtol=1e-4, atol=1e-4)
    np.testing.assert_allclose(np.asarray(c_n2), np.asarray(ref_c2),
                               rtol=1e-4, atol=1e-4)

    # --- 3) default perf path (bf16 gates_x): loose check --------------------
    logits_bf, (h_bf, c_bf) = rnn_forward(mb, params, hidden=None)
    logits_bf = jax.block_until_ready(logits_bf)
    np.testing.assert_allclose(np.asarray(logits_bf), np.asarray(ref_logits),
                               rtol=5e-2, atol=5e-2)

    print("KERNEL_OK")
</pallas_src>

<mosaic_0001>
module attributes {stable_mosaic.version = 11 : i64} {
  func.func @_matmul_bias_kernel(%arg0: i32, %arg1: i32, %arg2: memref<64x32xf32, #tpu.memory_space<vmem>>, %arg3: memref<32x512xf32, #tpu.memory_space<vmem>>, %arg4: memref<1x512xf32, #tpu.memory_space<vmem>>, %arg5: memref<64x512xf32, #tpu.memory_space<vmem>>) attributes {dimension_semantics = [#tpu.dimension_semantics<parallel>, #tpu.dimension_semantics<parallel>], iteration_bounds = array<i64: 1, 1>, scalar_prefetch = 0 : i64, scratch_operands = 0 : i64, tpu.core_type = #tpu.core_type<tc>, window_params = [{transform_indices = @transform_0, window_bounds = array<i64: 64, 32>}, {transform_indices = @transform_1, window_bounds = array<i64: 32, 512>}, {transform_indices = @transform_2, window_bounds = array<i64: 1, 512>}, {transform_indices = @transform_3, window_bounds = array<i64: 64, 512>}]} {
    %c0 = arith.constant 0 : index
    %c0_0 = arith.constant 0 : index
    %0 = vector.load %arg2[%c0, %c0_0] : memref<64x32xf32, #tpu.memory_space<vmem>>, vector<64x32xf32>
    %c0_1 = arith.constant 0 : index
    %c0_2 = arith.constant 0 : index
    %1 = vector.load %arg3[%c0_1, %c0_2] : memref<32x512xf32, #tpu.memory_space<vmem>>, vector<32x512xf32>
    %cst = arith.constant dense<0.000000e+00> : vector<64x512xf32>
    %2 = tpu.matmul %0, %1, %cst {dimension_numbers = #tpu.dot_dimension_numbers<[1], [0], [0], [1], [0, 0, 1, 1], [], []>} : vector<64x32xf32>, vector<32x512xf32>, vector<64x512xf32> -> vector<64x512xf32>
    %c0_3 = arith.constant 0 : index
    %c0_4 = arith.constant 0 : index
    %3 = vector.load %arg4[%c0_3, %c0_4] : memref<1x512xf32, #tpu.memory_space<vmem>>, vector<1x512xf32>
    %4 = vector.broadcast %3 : vector<1x512xf32> to vector<64x512xf32>
    %5 = arith.addf %2, %4 : vector<64x512xf32>
    %c0_5 = arith.constant 0 : index
    %c0_6 = arith.constant 0 : index
    %6 = vector.load %arg5[%c0_5, %c0_6] : memref<64x512xf32, #tpu.memory_space<vmem>>, vector<64x512xf32>
    tpu.vector_store %arg5[%c0_5, %c0_6], %5 {strides = array<i32>} : memref<64x512xf32, #tpu.memory_space<vmem>>, vector<64x512xf32>,
    return
  }
  func.func @transform_0(%arg0: i32, %arg1: i32) -> (i32, i32) {
    %c0_i32 = arith.constant 0 : i32
    %c0_i32_0 = arith.constant 0 : i32
    return %arg1, %c0_i32 : i32, i32
  }
  func.func @transform_1(%arg0: i32, %arg1: i32) -> (i32, i32) {
    %c0_i32 = arith.constant 0 : i32
    %c0_i32_0 = arith.constant 0 : i32
    return %c0_i32, %arg0 : i32, i32
  }
  func.func @transform_2(%arg0: i32, %arg1: i32) -> (i32, i32) {
    %c0_i32 = arith.constant 0 : i32
    %c0_i32_0 = arith.constant 0 : i32
    return %c0_i32, %arg0 : i32, i32
  }
  func.func @transform_3(%arg0: i32, %arg1: i32) -> (i32, i32) {
    %c0_i32 = arith.constant 0 : i32
    return %arg1, %arg0 : i32, i32
  }
}

</mosaic_0001>

<llo_original>
// kernel: tpu_custom_call.1
$region0: #{tpu_custom_call.1}
  #allocation0 [shape = 'u32[]', space=smem, size = 0x4, offset = 0x4, fixed_abs, tag = 'smem constant byte address 0x4 - core index']
  #allocation1 [shape = 'u32[144,128]{1,0:T(1,128)}', space=vmem, size = 0x12000, scoped, tag = 'internal scratch']
  %s0 = inlined_call_operand.hbm [shape: f32[64,32], index: 0, kind: input, shape index: {}]
  %s1 = inlined_call_operand.hbm [shape: f32[32,512], index: 1, kind: input, shape index: {}]
  %s2 = inlined_call_operand.hbm [shape: f32[1,512], index: 2, kind: input, shape index: {}]
  %s3 = inlined_call_operand.hbm [shape: f32[64,512], index: 3, kind: output, shape index: {}]
  %s4 = sld [smem:[#allocation0]]
  $region34: #{tpu_custom_call.1} parent=0
    _
  %s6 = ssub.s32 1, %s4
  %s7 = scalar_select 0, %s6, %s4
  $region1: #{tpu_custom_call.1} parent=0
    #allocation2 [shape = 'u8[32768]{0}', space=vmem, size = 0x8000, scoped, tag = 'input window, operand 0, single buffered']
    #allocation3 [shape = 's32[1]{0}', space=sflag, size = 0x4, scoped, tag = 'scoped memory for tpu_custom_call.1']
    #allocation4 [shape = 's32[1]{0}', space=sflag, size = 0x4, scoped, tag = 'scoped memory for tpu_custom_call.1']
    #allocation5 [shape = 'u8[65536]{0}', space=vmem, size = 0x10000, scoped, tag = 'input window, operand 1, single buffered']
    #allocation6 [shape = 's32[1]{0}', space=sflag, size = 0x4, scoped, tag = 'scoped memory for tpu_custom_call.1']
    #allocation7 [shape = 'u8[2048]{0}', space=vmem, size = 0x800, scoped, tag = 'input window, operand 2, single buffered']
    #allocation8 [shape = 'u8[131072]{0}', space=vmem, size = 0x20000, scoped, tag = 'output window, operand 0, single buffered']
    %8 = vsyncpa [#allocation3], 0
    %9 = vsyncpa [#allocation6], 0
    %10 = vsyncpa [#allocation4], 0
    // Predicated region
    $region2: #{tpu_custom_call.1} parent=1 // pred_check
      _
    $region3: #{tpu_custom_call.1} parent=1 // pred_check_branch
      %12 = sbr.rel (0) target = $region5
    $region4: #{tpu_custom_call.1} parent=1 // pred_region
      %s14 = ssub.s32 1024, 1024
      %15 = vsyncadd [#allocation3], %s14
      %s16 = sshll.u32 [#allocation2], 4
      %s17 = int_to_ptr.vmem [resolvable:$true] %s16
      %22 = dma.hbm_to_vmem [thread:$0]  %s0, 1024, %s17, [#allocation3], 128, 128, 8
    $region5: #{tpu_custom_call.1} parent=1 // pred_fallthru
      _
    // Predicated region
    $region6: #{tpu_custom_call.1} parent=1 // pred_check
      _
    $region7: #{tpu_custom_call.1} parent=1 // pred_check_branch
      %24 = sbr.rel (0) target = $region9
    $region8: #{tpu_custom_call.1} parent=1 // pred_region
      %s26 = ssub.s32 2048, 2048
      %27 = vsyncadd [#allocation6], %s26
      %s28 = sshll.u32 [#allocation5], 4
      %s29 = int_to_ptr.vmem [resolvable:$true] %s28
      %34 = dma.hbm_to_vmem [thread:$0]  %s1, 2048, %s29, [#allocation6], 512, 512, 32
    $region9: #{tpu_custom_call.1} parent=1 // pred_fallthru
      _
    // Predicated region
    $region10: #{tpu_custom_call.1} parent=1 // pred_check
      _
    $region11: #{tpu_custom_call.1} parent=1 // pred_check_branch
      %36 = sbr.rel (0) target = $region13
    $region12: #{tpu_custom_call.1} parent=1 // pred_region
      %s38 = ssub.s32 64, 64
      %39 = vsyncadd [#allocation6], %s38
      %s41 = sshll.u32 [#allocation7], 4
      %s42 = int_to_ptr.vmem [resolvable:$true] %s41
      %44 = dma.hbm_to_vmem [thread:$0]  %s2, 64, %s42, [#allocation6]
    $region13: #{tpu_custom_call.1} parent=1 // pred_fallthru
      _
    // Predicated region
    $region14: #{tpu_custom_call.1} parent=1 // pred_check
      _
    $region15: #{tpu_custom_call.1} parent=1 // pred_check_branch
      %46 = sbr.rel (0) target = $region17
    $region16: #{tpu_custom_call.1} parent=1 // pred_region
      %47 = dma.done [#allocation3], 1024
    $region17: #{tpu_custom_call.1} parent=1 // pred_fallthru
      _
    // Predicated region
    $region18: #{tpu_custom_call.1} parent=1 // pred_check
      _
    $region19: #{tpu_custom_call.1} parent=1 // pred_check_branch
      %49 = sbr.rel (0) target = $region21
    $region20: #{tpu_custom_call.1} parent=1 // pred_region
      %50 = dma.done [#allocation6], 2048
    $region21: #{tpu_custom_call.1} parent=1 // pred_fallthru
      _
    // Predicated region
    $region22: #{tpu_custom_call.1} parent=1 // pred_check
      _
    $region23: #{tpu_custom_call.1} parent=1 // pred_check_branch
      %52 = sbr.rel (0) target = $region25
    $region24: #{tpu_custom_call.1} parent=1 // pred_region
      %53 = dma.done [#allocation6], 64
    $region25: #{tpu_custom_call.1} parent=1 // pred_fallthru
      _
    %v54 = vld [vmem:[#allocation2] sm:$0xff]
    %v55 = vld [vmem:[#allocation2 + $0x8] sm:$0xff]
    %v56 = vld [vmem:[#allocation2 + $0x10] sm:$0xff]
    %v57 = vld [vmem:[#allocation2 + $0x18] sm:$0xff]
    %v58 = vld [vmem:[#allocation2 + $0x20] sm:$0xff]
    %v59 = vld [vmem:[#allocation2 + $0x28] sm:$0xff]
    %v60 = vld [vmem:[#allocation2 + $0x30] sm:$0xff]
    %v61 = vld [vmem:[#allocation2 + $0x38] sm:$0xff]
    %v62 = vld [vmem:[#allocation5] sm:$0xff]
    %v63 = vld [vmem:[#allocation5 + $0x8] sm:$0xff]
    %v64 = vld [vmem:[#allocation5 + $0x10] sm:$0xff]
    %v65 = vld [vmem:[#allocation5 + $0x18] sm:$0xff]
    %v66 = vld [vmem:[#allocation5 + $0x20] sm:$0xff]
    %v67 = vld [vmem:[#allocation5 + $0x28] sm:$0xff]
    %v68 = vld [vmem:[#allocation5 + $0x30] sm:$0xff]
    %v69 = vld [vmem:[#allocation5 + $0x38] sm:$0xff]
    %v70 = vld [vmem:[#allocation5 + $0x40] sm:$0xff]
    %v71 = vld [vmem:[#allocation5 + $0x48] sm:$0xff]
    %v72 = vld [vmem:[#allocation5 + $0x50] sm:$0xff]
    %v73 = vld [vmem:[#allocation5 + $0x58] sm:$0xff]
    %v74 = vld [vmem:[#allocation5 + $0x60] sm:$0xff]
    %v75 = vld [vmem:[#allocation5 + $0x68] sm:$0xff]
    %v76 = vld [vmem:[#allocation5 + $0x70] sm:$0xff]
    %v77 = vld [vmem:[#allocation5 + $0x78] sm:$0xff]
    %v78 = vld [vmem:[#allocation7] sm:$0xf]
    %v80 = vlaneseq
    %v81 = vshrl.u32 %v80, 7
    %v82 = vsub.s32 0, %v81
    %v83 = vrot.slane %v78, %v82
    %v84 = vlaneseq
    %v85 = vshrl.u32 %v84, 7
    %v86 = vsub.s32 1, %v85
    %v87 = vrot.slane %v78, %v86
    %v88 = vlaneseq
    %v89 = vshrl.u32 %v88, 7
    %v90 = vsub.s32 2, %v89
    %v91 = vrot.slane %v78, %v90
    %v92 = vlaneseq
    %v93 = vshrl.u32 %v92, 7
    %v94 = vsub.s32 3, %v93
    %v95 = vrot.slane %v78, %v94
    %vm100 = vcmask 261120
    %v102 = vsel %vm100, %v54, 0
    %v105 = vsel %vm100, %v55, 0
    %v108 = vsel %vm100, %v56, 0
    %v111 = vsel %vm100, %v57, 0
    %v114 = vsel %vm100, %v58, 0
    %v117 = vsel %vm100, %v59, 0
    %v120 = vsel %vm100, %v60, 0
    %v123 = vsel %vm100, %v61, 0
    %125 = vmatprep.subr.mxu0 %v63
    %126 = vmatpush1.msra.mxu0 %v62
    %127 = vmatprep.subr.mxu0 %v67
    %128 = vmatpush1.msra.mxu0 %v66
    %129 = vmatprep.subr.mxu0 %v71
    %130 = vmatpush1.msra.mxu0 %v70
    %131 = vmatprep.subr.mxu0 %v75
    %132 = vmatpush1.msra.mxu0 %v74
    %133 = vmatprep.subr.mxu0 0.0
    %134 = vmatpush1.msra.mxu0 0.0
    %135 = vmatprep.subr.mxu0 0.0
    %136 = vmatpush1.msra.mxu0 0.0
    %137 = vmatprep.subr.mxu0 0.0
    %138 = vmatpush1.msra.mxu0 0.0
    %139 = vmatprep.subr.mxu0 0.0
    %140 = vmatpush1.msra.mxu0 0.0
    %141 = vmatprep.subr.mxu0 0.0
    %142 = vmatpush1.msra.mxu0 0.0
    %143 = vmatprep.subr.mxu0 0.0
    %144 = vmatpush1.msra.mxu0 0.0
    %145 = vmatprep.subr.mxu0 0.0
    %146 = vmatpush1.msra.mxu0 0.0
    %147 = vmatprep.subr.mxu0 0.0
    %148 = vmatpush1.msra.mxu0 0.0
    %149 = vmatprep.subr.mxu0 0.0
    %150 = vmatpush1.msra.mxu0 0.0
    %151 = vmatprep.subr.mxu0 0.0
    %152 = vmatpush1.msra.mxu0 0.0
    %153 = vmatprep.subr.mxu0 0.0
    %154 = vmatpush1.msra.mxu0 0.0
    %155 = vmatprep.subr.mxu0 0.0
    %156 = vmatpush1.msra.mxu0 0.0
    %157 = vmatprep.subr.mxu0 0.0
    %158 = vmatpush1.msra.mxu0 0.0
    %159 = vmatprep.subr.mxu0 0.0
    %160 = vmatpush1.msra.mxu0 0.0
    %161 = vmatprep.subr.mxu0 0.0
    %162 = vmatpush1.msra.mxu0 0.0
    %163 = vmatprep.subr.mxu0 0.0
    %164 = vmatpush1.msra.mxu0 0.0
    %165 = vmatprep.subr.mxu0 0.0
    %166 = vmatpush1.msra.mxu0 0.0
    %167 = vmatprep.subr.mxu0 0.0
    %168 = vmatpush1.msra.mxu0 0.0
    %169 = vmatprep.subr.mxu0 0.0
    %170 = vmatpush1.msra.mxu0 0.0
    %171 = vmatprep.subr.mxu0 0.0
    %172 = vmatpush1.msra.mxu0 0.0
    %173 = vmatprep.subr.mxu0 0.0
    %174 = vmatpush1.msra.mxu0 0.0
    %175 = vmatprep.subr.mxu0 0.0
    %176 = vmatpush1.msra.mxu0 0.0
    %177 = vmatprep.subr.mxu0 0.0
    %178 = vmatpush1.msra.mxu0 0.0
    %179 = vmatprep.subr.mxu0 0.0
    %180 = vmatpush1.msra.mxu0 0.0
    %181 = vmatprep.subr.mxu0 0.0
    %182 = vmatpush1.msra.mxu0 0.0
    %183 = vmatprep.subr.mxu0 0.0
    %184 = vmatpush1.msra.mxu0 0.0
    %185 = vmatprep.subr.mxu0 0.0
    %186 = vmatpush1.msra.mxu0 0.0
    %187 = vmatprep.subr.mxu0 0.0
    %188 = vmatpush1.msra.mxu0 0.0
    %189 = vmatprep.mubr.f32.mxu0 0.0
    %190 = vmatmul.mubr.f32.gmra.mrb[0].mxu0 %v102
    %v191 = vpop.f32.mrb[0].mxu0
    %v192 = vadd.f32 %v83, %v191
    %v193 = vpop.f32.mrb[0].mxu0
    %v194 = vadd.f32 %v87, %v193
    %195 = vmatprep.mubr.f32.mxu0 0.0
    %196 = vmatmul.mubr.f32.gmra.mrb[0].mxu0 %v105
    %v197 = vpop.f32.mrb[0].mxu0
    %v198 = vadd.f32 %v83, %v197
    %v199 = vpop.f32.mrb[0].mxu0
    %v200 = vadd.f32 %v87, %v199
    %201 = vmatprep.mubr.f32.mxu0 0.0
    %202 = vmatmul.mubr.f32.gmra.mrb[0].mxu0 %v108
    %v203 = vpop.f32.mrb[0].mxu0
    %v204 = vadd.f32 %v83, %v203
    %v205 = vpop.f32.mrb[0].mxu0
    %v206 = vadd.f32 %v87, %v205
    %207 = vmatprep.mubr.f32.mxu0 0.0
    %208 = vmatmul.mubr.f32.gmra.mrb[0].mxu0 %v111
    %v209 = vpop.f32.mrb[0].mxu0
    %v210 = vadd.f32 %v83, %v209
    %v211 = vpop.f32.mrb[0].mxu0
    %v212 = vadd.f32 %v87, %v211
    %213 = vmatprep.mubr.f32.mxu0 0.0
    %214 = vmatmul.mubr.f32.gmra.mrb[0].mxu0 %v114
    %v215 = vpop.f32.mrb[0].mxu0
    %v216 = vadd.f32 %v83, %v215
    %v217 = vpop.f32.mrb[0].mxu0
    %v218 = vadd.f32 %v87, %v217
    %219 = vmatprep.mubr.f32.mxu0 0.0
    %220 = vmatmul.mubr.f32.gmra.mrb[0].mxu0 %v117
    %v221 = vpop.f32.mrb[0].mxu0
    %v222 = vadd.f32 %v83, %v221
    %v223 = vpop.f32.mrb[0].mxu0
    %v224 = vadd.f32 %v87, %v223
    %225 = vmatprep.mubr.f32.mxu0 0.0
    %226 = vmatmul.mubr.f32.gmra.mrb[0].mxu0 %v120
    %v227 = vpop.f32.mrb[0].mxu0
    %v228 = vadd.f32 %v83, %v227
    %v229 = vpop.f32.mrb[0].mxu0
    %v230 = vadd.f32 %v87, %v229
    %231 = vmatprep.mubr.f32.mxu0 0.0
    %232 = vmatmul.mubr.f32.gmra.mrb[0].mxu0 %v123
    %v233 = vpop.f32.mrb[0].mxu0
    %v234 = vadd.f32 %v83, %v233
    %v235 = vpop.f32.mrb[0].mxu0
    %v236 = vadd.f32 %v87, %v235
    %237 = vdwg.mxu0
    %238 = vmatprep.subr.mxu0 %v65
    %239 = vmatpush1.msra.mxu0 %v64
    %240 = vmatprep.subr.mxu0 %v69
    %241 = vmatpush1.msra.mxu0 %v68
    %242 = vmatprep.subr.mxu0 %v73
    %243 = vmatpush1.msra.mxu0 %v72
    %244 = vmatprep.subr.mxu0 %v77
    %245 = vmatpush1.msra.mxu0 %v76
    %246 = vmatprep.subr.mxu0 0.0
    %247 = vmatpush1.msra.mxu0 0.0
    %248 = vmatprep.subr.mxu0 0.0
    %249 = vmatpush1.msra.mxu0 0.0
    %250 = vmatprep.subr.mxu0 0.0
    %251 = vmatpush1.msra.mxu0 0.0
    %252 = vmatprep.subr.mxu0 0.0
    %253 = vmatpush1.msra.mxu0 0.0
    %254 = vmatprep.subr.mxu0 0.0
    %255 = vmatpush1.msra.mxu0 0.0
    %256 = vmatprep.subr.mxu0 0.0
    %257 = vmatpush1.msra.mxu0 0.0
    %258 = vmatprep.subr.mxu0 0.0
    %259 = vmatpush1.msra.mxu0 0.0
    %260 = vmatprep.subr.mxu0 0.0
    %261 = vmatpush1.msra.mxu0 0.0
    %262 = vmatprep.subr.mxu0 0.0
    %263 = vmatpush1.msra.mxu0 0.0
    %264 = vmatprep.subr.mxu0 0.0
    %265 = vmatpush1.msra.mxu0 0.0
    %266 = vmatprep.subr.mxu0 0.0
    %267 = vmatpush1.msra.mxu0 0.0
    %268 = vmatprep.subr.mxu0 0.0
    %269 = vmatpush1.msra.mxu0 0.0
    %270 = vmatprep.subr.mxu0 0.0
    %271 = vmatpush1.msra.mxu0 0.0
    %272 = vmatprep.subr.mxu0 0.0
    %273 = vmatpush1.msra.mxu0 0.0
    %274 = vmatprep.subr.mxu0 0.0
    %275 = vmatpush1.msra.mxu0 0.0
    %276 = vmatprep.subr.mxu0 0.0
    %277 = vmatpush1.msra.mxu0 0.0
    %278 = vmatprep.subr.mxu0 0.0
    %279 = vmatpush1.msra.mxu0 0.0
    %280 = vmatprep.subr.mxu0 0.0
    %281 = vmatpush1.msra.mxu0 0.0
    %282 = vmatprep.subr.mxu0 0.0
    %283 = vmatpush1.msra.mxu0 0.0
    %284 = vmatprep.subr.mxu0 0.0
    %285 = vmatpush1.msra.mxu0 0.0
    %286 = vmatprep.subr.mxu0 0.0
    %287 = vmatpush1.msra.mxu0 0.0
    %288 = vmatprep.subr.mxu0 0.0
    %289 = vmatpush1.msra.mxu0 0.0
    %290 = vmatprep.subr.mxu0 0.0
    %291 = vmatpush1.msra.mxu0 0.0
    %292 = vmatprep.subr.mxu0 0.0
    %293 = vmatpush1.msra.mxu0 0.0
    %294 = vmatprep.subr.mxu0 0.0
    %295 = vmatpush1.msra.mxu0 0.0
    %296 = vmatprep.subr.mxu0 0.0
    %297 = vmatpush1.msra.mxu0 0.0
    %298 = vmatprep.subr.mxu0 0.0
    %299 = vmatpush1.msra.mxu0 0.0
    %300 = vmatprep.subr.mxu0 0.0
    %301 = vmatpush1.msra.mxu0 0.0
    %302 = vmatprep.mubr.f32.mxu0 0.0
    %303 = vmatmul.mubr.f32.gmra.mrb[0].mxu0 %v102
    %v304 = vpop.f32.mrb[0].mxu0
    %v305 = vadd.f32 %v91, %v304
    %v306 = vpop.f32.mrb[0].mxu0
    %v307 = vadd.f32 %v95, %v306
    %308 = vmatprep.mubr.f32.mxu0 0.0
    %309 = vmatmul.mubr.f32.gmra.mrb[0].mxu0 %v105
    %v310 = vpop.f32.mrb[0].mxu0
    %v311 = vadd.f32 %v91, %v310
    %v312 = vpop.f32.mrb[0].mxu0
    %v313 = vadd.f32 %v95, %v312
    %314 = vmatprep.mubr.f32.mxu0 0.0
    %315 = vmatmul.mubr.f32.gmra.mrb[0].mxu0 %v108
    %v316 = vpop.f32.mrb[0].mxu0
    %v317 = vadd.f32 %v91, %v316
    %v318 = vpop.f32.mrb[0].mxu0
    %v319 = vadd.f32 %v95, %v318
    %320 = vmatprep.mubr.f32.mxu0 0.0
    %321 = vmatmul.mubr.f32.gmra.mrb[0].mxu0 %v111
    %v322 = vpop.f32.mrb[0].mxu0
    %v323 = vadd.f32 %v91, %v322
    %v324 = vpop.f32.mrb[0].mxu0
    %v325 = vadd.f32 %v95, %v324
    %326 = vmatprep.mubr.f32.mxu0 0.0
    %327 = vmatmul.mubr.f32.gmra.mrb[0].mxu0 %v114
    %v328 = vpop.f32.mrb[0].mxu0
    %v329 = vadd.f32 %v91, %v328
    %v330 = vpop.f32.mrb[0].mxu0
    %v331 = vadd.f32 %v95, %v330
    %332 = vmatprep.mubr.f32.mxu0 0.0
    %333 = vmatmul.mubr.f32.gmra.mrb[0].mxu0 %v117
    %v334 = vpop.f32.mrb[0].mxu0
    %v335 = vadd.f32 %v91, %v334
    %v336 = vpop.f32.mrb[0].mxu0
    %v337 = vadd.f32 %v95, %v336
    %338 = vmatprep.mubr.f32.mxu0 0.0
    %339 = vmatmul.mubr.f32.gmra.mrb[0].mxu0 %v120
    %v340 = vpop.f32.mrb[0].mxu0
    %v341 = vadd.f32 %v91, %v340
    %v342 = vpop.f32.mrb[0].mxu0
    %v343 = vadd.f32 %v95, %v342
    %344 = vmatprep.mubr.f32.mxu0 0.0
    %345 = vmatmul.mubr.f32.gmra.mrb[0].mxu0 %v123
    %v346 = vpop.f32.mrb[0].mxu0
    %v347 = vadd.f32 %v91, %v346
    %v348 = vpop.f32.mrb[0].mxu0
    %v349 = vadd.f32 %v95, %v348
    %350 = vdwg.mxu0
    %351 = vst [vmem:[#allocation8] sm:$0xff] %v192
    %352 = vst [vmem:[#allocation8 + $0x8] sm:$0xff] %v194
    %353 = vst [vmem:[#allocation8 + $0x10] sm:$0xff] %v305
    %354 = vst [vmem:[#allocation8 + $0x18] sm:$0xff] %v307
    %355 = vst [vmem:[#allocation8 + $0x20] sm:$0xff] %v198
    %356 = vst [vmem:[#allocation8 + $0x28] sm:$0xff] %v200
    %357 = vst [vmem:[#allocation8 + $0x30] sm:$0xff] %v311
    %358 = vst [vmem:[#allocation8 + $0x38] sm:$0xff] %v313
    %359 = vst [vmem:[#allocation8 + $0x40] sm:$0xff] %v204
    %360 = vst [vmem:[#allocation8 + $0x48] sm:$0xff] %v206
    %361 = vst [vmem:[#allocation8 + $0x50] sm:$0xff] %v317
    %362 = vst [vmem:[#allocation8 + $0x58] sm:$0xff] %v319
    %363 = vst [vmem:[#allocation8 + $0x60] sm:$0xff] %v210
    %364 = vst [vmem:[#allocation8 + $0x68] sm:$0xff] %v212
    %365 = vst [vmem:[#allocation8 + $0x70] sm:$0xff] %v323
    %366 = vst [vmem:[#allocation8 + $0x78] sm:$0xff] %v325
    %367 = vst [vmem:[#allocation8 + $0x80] sm:$0xff] %v216
    %368 = vst [vmem:[#allocation8 + $0x88] sm:$0xff] %v218
    %369 = vst [vmem:[#allocation8 + $0x90] sm:$0xff] %v329
    %370 = vst [vmem:[#allocation8 + $0x98] sm:$0xff] %v331
    %371 = vst [vmem:[#allocation8 + $0xa0] sm:$0xff] %v222
    %372 = vst [vmem:[#allocation8 + $0xa8] sm:$0xff] %v224
    %373 = vst [vmem:[#allocation8 + $0xb0] sm:$0xff] %v335
    %374 = vst [vmem:[#allocation8 + $0xb8] sm:$0xff] %v337
    %375 = vst [vmem:[#allocation8 + $0xc0] sm:$0xff] %v228
    %376 = vst [vmem:[#allocation8 + $0xc8] sm:$0xff] %v230
    %377 = vst [vmem:[#allocation8 + $0xd0] sm:$0xff] %v341
    %378 = vst [vmem:[#allocation8 + $0xd8] sm:$0xff] %v343
    %379 = vst [vmem:[#allocation8 + $0xe0] sm:$0xff] %v234
    %380 = vst [vmem:[#allocation8 + $0xe8] sm:$0xff] %v236
    %381 = vst [vmem:[#allocation8 + $0xf0] sm:$0xff] %v347
    %382 = vst [vmem:[#allocation8 + $0xf8] sm:$0xff] %v349
    // Predicated region
    $region26: #{tpu_custom_call.1} parent=1 // pred_check
      _
    $region27: #{tpu_custom_call.1} parent=1 // pred_check_branch
      %384 = sbr.rel (0) target = $region29
    $region28: #{tpu_custom_call.1} parent=1 // pred_region
      %s386 = ssub.s32 4096, 4096
      %387 = vsyncadd [#allocation4], %s386
      %s388 = sshll.u32 [#allocation8], 4
      %s389 = int_to_ptr.vmem [resolvable:$true] %s388
      %394 = dma.vmem_to_hbm [thread:$0]  %s389, 4096, %s3, [#allocation4], 512, 512, 32
    $region29: #{tpu_custom_call.1} parent=1 // pred_fallthru
      _
    // Predicated region
    $region30: #{tpu_custom_call.1} parent=1 // pred_check
      _
    $region31: #{tpu_custom_call.1} parent=1 // pred_check_branch
      %396 = sbr.rel (0) target = $region33
    $region32: #{tpu_custom_call.1} parent=1 // pred_region
      %397 = dma.done [#allocation4], 4096
    $region33: #{tpu_custom_call.1} parent=1 // pred_fallthru
      _
    %398 = vsyncpa [#allocation3], 1
    %399 = vsyncpa [#allocation6], 1
    %400 = vsyncpa [#allocation4], 1

</llo_original>
